<compile_context>
chip_gen: v5e
topology: v5e:2x2
jax: 0.10.0
libtpu: 0.0.40
codegen_flags: <defaults>
</compile_context>

<pallas_src>
import jax
import jax.numpy as jnp
from jax.experimental import pallas as pl
from jax.experimental.pallas import tpu as pltpu


def _relu_kernel(x_ref, o_ref):
    # Elementwise clamp(min=0) == max(x, 0); runs on the VPU.
    o_ref[...] = jnp.maximum(x_ref[...], jnp.zeros((), dtype=x_ref.dtype))


_PREFERRED_LANES = (8192, 4096, 2048, 1024, 512, 256, 128)


def _tpu_caps():
    """Best-effort (vmem_capacity_bytes, num_tensorcores); safe fallbacks."""
    vmem_bytes = 64 << 20   # conservative default == v7x physical VMEM
    num_tcs = 1
    try:
        info = pltpu.get_tpu_info()
        vmem_bytes = int(getattr(info, "vmem_capacity_bytes", vmem_bytes))
        for attr in ("num_cores", "tensor_cores_per_chip", "num_tensorcores"):
            v = getattr(info, attr, None)
            if isinstance(v, int) and v > 0:
                num_tcs = v
                break
    except Exception:
        pass
    if num_tcs == 1:
        try:
            kind = jax.devices()[0].device_kind.lower()
            if "v7" in kind:
                num_tcs = 2
        except Exception:
            pass
    return vmem_bytes, num_tcs


def _choose_layout(n: int):
    """Lane-dense 2D factorization (rows, cols) of n, cols a multiple of 128.

    Returns None if n has no multiple-of-128 divisor (caller falls back to
    plain jnp.maximum; padding would add a full extra HBM pass each way).
    """
    for cols in _PREFERRED_LANES:
        if n % cols == 0:
            return n // cols, cols
    return None


def _choose_tile_rows(rows: int, cols: int, itemsize: int, num_tcs: int,
                      target_bytes: int) -> int:
    """Row-tile sized toward ~target_bytes, aligned to the sublane multiple.

    On multi-TensorCore chips the grid is forced to an even (>=2) number of
    steps when rows allow, so the "parallel" axis shards evenly across TCs.
    """
    # f32 -> 8 rows per sublane tile, bf16 -> 16, int8/fp8 -> 32.
    sub = 8 if itemsize >= 4 else (16 if itemsize == 2 else 32)
    if rows <= sub:
        return rows  # full (un-tiled) row dim; allowed by the (8,128) rule.
    t = max(target_bytes // (cols * itemsize), 1)
    t = max((t // sub) * sub, sub)
    t = min(t, rows)
    if num_tcs >= 2 and rows >= 2 * sub:
        g = pl.cdiv(rows, t)
        if g < 2:
            g = 2
        if g % 2 == 1:
            g += 1
        t = pl.cdiv(rows, g)
        t = max(((t + sub - 1) // sub) * sub, sub)  # round up to sublane mult
        t = min(t, rows)
    return t


def relu_pallas(x: jax.Array, *, min_bytes_for_pallas: int = 1 << 20,
                donate: bool = False) -> jax.Array:
    """Elementwise ReLU via a Pallas TPU kernel. Matches torch clamp(min=0)."""
    if x.size == 0:
        return x

    nbytes = x.size * x.dtype.itemsize
    if nbytes < min_bytes_for_pallas and min_bytes_for_pallas > 0:
        # Tiny tensors: pallas_call launch + pipeline prologue dwarfs the
        # copy; XLA's fused elementwise is strictly faster here.
        return jnp.maximum(x, jnp.zeros((), dtype=x.dtype))

    layout = _choose_layout(x.size)
    if layout is None:
        # Ragged element count (no multiple-of-128 divisor): padding + slicing
        # would roughly triple the HBM traffic of this memory-bound op.
        return jnp.maximum(x, jnp.zeros((), dtype=x.dtype))

    rows, cols = layout
    orig_shape = x.shape
    x2 = x.reshape(rows, cols)
    itemsize = x2.dtype.itemsize

    vmem_bytes, num_tcs = _tpu_caps()
    vmem_cap = max(32 << 20, (vmem_bytes * 3) // 4)   # ~48 MiB v7x, ~96 MiB v5e/v6e
    target_block = min(8 << 20, vmem_cap // 6)        # double-buffered in+out fits

    tile_r = _choose_tile_rows(rows, cols, itemsize, num_tcs, target_block)
    grid_r = pl.cdiv(rows, tile_r)

    block_bytes = tile_r * cols * itemsize
    vmem_limit = int(min(vmem_cap, max(32 << 20, 6 * block_bytes)))

    out2 = pl.pallas_call(
        _relu_kernel,
        out_shape=jax.ShapeDtypeStruct((rows, cols), x2.dtype),
        grid_spec=pltpu.PrefetchScalarGridSpec(
            num_scalar_prefetch=0,
            grid=(grid_r,),
            in_specs=[pl.BlockSpec((tile_r, cols), lambda i: (i, 0))],
            out_specs=pl.BlockSpec((tile_r, cols), lambda i: (i, 0)),
        ),
        compiler_params=pltpu.CompilerParams(
            dimension_semantics=("parallel",),
            vmem_limit_bytes=vmem_limit,
        ),
        input_output_aliases=({0: 0} if donate else {}),
    )(x2)

    return out2.reshape(orig_shape)


if __name__ == "__main__":
    k0, k1, k2, k3 = jax.random.split(jax.random.PRNGKey(0), 4)

    # 1) Small NCHW input matching the module's typical use; forced through
    #    the Pallas path so the kernel itself is exercised.
    x_small = jax.random.normal(k0, (2, 4, 16, 16), dtype=jnp.float32)
    y_small = relu_pallas(x_small, min_bytes_for_pallas=0)
    jax.block_until_ready(y_small)
    assert y_small.shape == x_small.shape and y_small.dtype == x_small.dtype
    assert jnp.array_equal(y_small, jnp.maximum(x_small, 0.0)), "small mismatch"

    # 2) Larger activation: lane-dense multi-block pipelined path.
    x_big = jax.random.normal(k1, (4, 32, 64, 64), dtype=jnp.float32)
    y_big = relu_pallas(x_big)
    jax.block_until_ready(y_big)
    assert jnp.array_equal(y_big, jnp.maximum(x_big, 0.0)), "big mismatch"

    # 3) Row count not divisible by the tile (exercises partial last block /
    #    masked writeback when the grid is force-split on multi-TC chips).
    x_part = jax.random.normal(k2, (5, 8, 64, 128), dtype=jnp.float32)
    y_part = relu_pallas(x_part, min_bytes_for_pallas=0)
    jax.block_until_ready(y_part)
    assert jnp.array_equal(y_part, jnp.maximum(x_part, 0.0)), "partial mismatch"

    # 4) Ragged element count (no multiple-of-128 divisor): clean fallback.
    x_odd = jax.random.normal(k3, (3, 5, 7, 11), dtype=jnp.float32)
    y_odd = relu_pallas(x_odd, min_bytes_for_pallas=0)
    jax.block_until_ready(y_odd)
    assert jnp.array_equal(y_odd, jnp.maximum(x_odd, 0.0)), "ragged mismatch"

    print("KERNEL_OK")
</pallas_src>

<mosaic_0001>
module attributes {stable_mosaic.version = 11 : i64} {
  func.func @_relu_kernel(%arg0: i32, %arg1: memref<1x2048xf32, #tpu.memory_space<vmem>>, %arg2: memref<1x2048xf32, #tpu.memory_space<vmem>>) attributes {dimension_semantics = [#tpu.dimension_semantics<parallel>], iteration_bounds = array<i64: 1>, scalar_prefetch = 0 : i64, scratch_operands = 0 : i64, tpu.core_type = #tpu.core_type<tc>, window_params = [{transform_indices = @transform_0, window_bounds = array<i64: 1, 2048>}, {transform_indices = @transform_1, window_bounds = array<i64: 1, 2048>}]} {
    %c0 = arith.constant 0 : index
    %c0_0 = arith.constant 0 : index
    %0 = vector.load %arg1[%c0, %c0_0] : memref<1x2048xf32, #tpu.memory_space<vmem>>, vector<1x2048xf32>
    %cst = arith.constant 0.000000e+00 : f32
    %1 = vector.broadcast %cst : f32 to vector<1x2048xf32>
    %2 = arith.maximumf %0, %1 : vector<1x2048xf32>
    %c0_1 = arith.constant 0 : index
    %c0_2 = arith.constant 0 : index
    %3 = vector.load %arg2[%c0_1, %c0_2] : memref<1x2048xf32, #tpu.memory_space<vmem>>, vector<1x2048xf32>
    tpu.vector_store %arg2[%c0_1, %c0_2], %2 {strides = array<i32>} : memref<1x2048xf32, #tpu.memory_space<vmem>>, vector<1x2048xf32>,
    return
  }
  func.func @transform_0(%arg0: i32) -> (i32, i32) {
    %c0_i32 = arith.constant 0 : i32
    %c0_i32_0 = arith.constant 0 : i32
    return %arg0, %c0_i32 : i32, i32
  }
  func.func @transform_1(%arg0: i32) -> (i32, i32) {
    %c0_i32 = arith.constant 0 : i32
    %c0_i32_0 = arith.constant 0 : i32
    return %arg0, %c0_i32 : i32, i32
  }
}

</mosaic_0001>

<llo_original>
// kernel: tpu_custom_call.1
$region0: #{tpu_custom_call.1}
  #allocation0 [shape = 'u32[]', space=smem, size = 0x4, offset = 0x4, fixed_abs, tag = 'smem constant byte address 0x4 - core index']
  #allocation1 [shape = 'u32[72,128]{1,0:T(1,128)}', space=vmem, size = 0x9000, scoped, tag = 'internal scratch']
  %s0 = inlined_call_operand.hbm [shape: f32[1,2048], index: 0, kind: input, shape index: {}]
  %s1 = inlined_call_operand.hbm [shape: f32[1,2048], index: 1, kind: output, shape index: {}]
  %s2 = sld [smem:[#allocation0]]
  $region18: #{tpu_custom_call.1} parent=0
    _
  %s4 = ssub.s32 1, %s2
  %s5 = scalar_select 0, %s4, %s2
  $region1: #{tpu_custom_call.1} parent=0
    #allocation2 [shape = 'u8[8192]{0}', space=vmem, size = 0x2000, scoped, tag = 'input window, operand 0, single buffered']
    #allocation3 [shape = 's32[1]{0}', space=sflag, size = 0x4, scoped, tag = 'scoped memory for tpu_custom_call.1']
    #allocation4 [shape = 's32[1]{0}', space=sflag, size = 0x4, scoped, tag = 'scoped memory for tpu_custom_call.1']
    #allocation5 [shape = 'u8[8192]{0}', space=vmem, size = 0x2000, scoped, tag = 'output window, operand 0, single buffered']
    %6 = vsyncpa [#allocation3], 0
    %7 = vsyncpa [#allocation4], 0
    // Predicated region
    $region2: #{tpu_custom_call.1} parent=1 // pred_check
      _
    $region3: #{tpu_custom_call.1} parent=1 // pred_check_branch
      %9 = sbr.rel (0) target = $region5
    $region4: #{tpu_custom_call.1} parent=1 // pred_region
      %11 = vsyncadd [#allocation3], 0
      %s13 = sshll.u32 %s0, 4
      %s14 = int_to_ptr.hbm [resolvable:$true] %s13
      %s15 = sshll.u32 [#allocation2], 4
      %s16 = int_to_ptr.vmem [resolvable:$true] %s15
      %18 = dma.hbm_to_vmem [thread:$0]  %s14, 256, %s16, [#allocation3]
    $region5: #{tpu_custom_call.1} parent=1 // pred_fallthru
      _
    // Predicated region
    $region6: #{tpu_custom_call.1} parent=1 // pred_check
      _
    $region7: #{tpu_custom_call.1} parent=1 // pred_check_branch
      %20 = sbr.rel (0) target = $region9
    $region8: #{tpu_custom_call.1} parent=1 // pred_region
      %22 = dma.done [#allocation3], 256
    $region9: #{tpu_custom_call.1} parent=1 // pred_fallthru
      _
    %v23 = vld [vmem:[#allocation2] sm:$0xff]
    %v24 = vld [vmem:[#allocation2 + $0x8] sm:$0xff]
    %v25 = vmax.f32 %v23, 0.0
    %v26 = vmax.f32 %v24, 0.0
    %27 = vst [vmem:[#allocation5] sm:$0xff] %v25
    %28 = vst [vmem:[#allocation5 + $0x8] sm:$0xff] %v26
    // Predicated region
    $region10: #{tpu_custom_call.1} parent=1 // pred_check
      _
    $region11: #{tpu_custom_call.1} parent=1 // pred_check_branch
      %30 = sbr.rel (0) target = $region13
    $region12: #{tpu_custom_call.1} parent=1 // pred_region
      %32 = vsyncadd [#allocation4], 0
      %s34 = sshll.u32 [#allocation5], 4
      %s35 = int_to_ptr.vmem [resolvable:$true] %s34
      %s36 = sshll.u32 %s1, 4
      %s37 = int_to_ptr.hbm [resolvable:$true] %s36
      %39 = dma.vmem_to_hbm [thread:$0]  %s35, 256, %s37, [#allocation4]
    $region13: #{tpu_custom_call.1} parent=1 // pred_fallthru
      _
    // Predicated region
    $region14: #{tpu_custom_call.1} parent=1 // pred_check
      _
    $region15: #{tpu_custom_call.1} parent=1 // pred_check_branch
      %41 = sbr.rel (0) target = $region17
    $region16: #{tpu_custom_call.1} parent=1 // pred_region
      %43 = dma.done [#allocation4], 256
    $region17: #{tpu_custom_call.1} parent=1 // pred_fallthru
      _
    %44 = vsyncpa [#allocation3], 1
    %45 = vsyncpa [#allocation4], 1

</llo_original>
